<compile_context>
chip_gen: v5e
topology: v5e:2x2
jax: 0.10.0
libtpu: 0.0.40
codegen_flags: <defaults>
</compile_context>

<pallas_src>
import functools

import jax
import jax.numpy as jnp
import numpy as np
from jax.experimental import pallas as pl
from jax.experimental.pallas import tpu as pltpu


_VMEM_BLOCK_BUDGET = 30 * 1024 * 1024   # bytes for pipelined blocks (safe on all gens)
_VMEM_LIMIT_BYTES = 48 * 1024 * 1024    # raised scoped-VMEM limit (< v7x 64 MiB phys)
_PALLAS_MIN_ELEMS = 1 << 16             # below this, plain XLA beats kernel launch


def _round_up(v, m):
    return (v + m - 1) // m * m


def _cdiv(a, b):
    return (a + b - 1) // b


def _linear_fullk_kernel(x_ref, wt_ref, b_ref, o_ref):
    """One (tm, tn) output tile; the whole contraction K is in-block."""
    acc = jnp.dot(x_ref[...], wt_ref[...], preferred_element_type=jnp.float32)
    o_ref[...] = (acc + b_ref[...]).astype(o_ref.dtype)


def _linear_ktiled_kernel(x_ref, wt_ref, b_ref, o_ref, acc_ref):
    """Fallback for huge in_features: grid axis 2 is the K reduction."""
    k = pl.program_id(2)

    @pl.when(k == 0)
    def _():
        acc_ref[...] = jnp.zeros_like(acc_ref)

    acc_ref[...] += jnp.dot(
        x_ref[...], wt_ref[...], preferred_element_type=jnp.float32
    )

    @pl.when(k == pl.num_programs(2) - 1)
    def _():
        o_ref[...] = (acc_ref[...] + b_ref[...]).astype(o_ref.dtype)


def _classifier_forward_pallas(x, weight, bias, *, out_dtype):
    B, K = x.shape
    N, _ = weight.shape

    x_isz = np.dtype(x.dtype).itemsize
    w_isz = np.dtype(weight.dtype).itemsize
    o_isz = np.dtype(out_dtype).itemsize

    # Lane alignment: contraction dim padded to 128 only if misaligned; the
    # (small) class dim padded to 128 so W.T / bias / output blocks are
    # lane-aligned and the output store is lane-dense.
    Kp0 = _round_up(K, 128)
    Np = _round_up(N, 128)

    # N tile: one lane group for small heads, 256-wide for big heads
    # (matches the 256-wide MXUs on v6e/v7x; harmless on v5e).
    tn = 128 if Np <= 128 else min(256, Np)

    # M tile: largest that fits the VMEM budget, capped so that (a) it never
    # exceeds the (8-aligned) batch and (b) there are >= 2 M blocks whenever
    # B > 8, so both v7x TensorCores get work on the "parallel" M axis.
    tm_align = _round_up(B, 8)
    tm_cap = _round_up(max(_cdiv(B, 2), 8), 8) if B > 8 else 8
    tm_limit = min(tm_align, tm_cap)

    def fullk_bytes(tm_):
        return (2 * tm_ * Kp0 * x_isz        # x block, double buffered
                + 2 * Kp0 * tn * w_isz       # W.T block (k-independent, resident)
                + 2 * tn * 4                 # bias (f32)
                + 2 * tm_ * tn * o_isz)      # output block

    tm = None
    for cand in (512, 256, 128, 64, 32, 16, 8):
        c = min(cand, tm_limit)
        if fullk_bytes(c) <= _VMEM_BLOCK_BUDGET:
            tm = c
            break

    if tm is not None:
        fullk = True
        Kp = Kp0
        tk = Kp
    else:
        # K-tiled fallback (very large in_features only).
        fullk = False
        tm = min(256, tm_limit)

        def tiled_bytes(tm_, tk_):
            return (2 * tm_ * tk_ * x_isz + 2 * tk_ * tn * w_isz
                    + 2 * tn * 4 + 2 * tm_ * tn * o_isz + tm_ * tn * 4)

        tk = 2048
        while tk > 128 and tiled_bytes(tm, tk) > _VMEM_BLOCK_BUDGET:
            tk //= 2
        while tiled_bytes(tm, tk) > _VMEM_BLOCK_BUDGET and tm > 8:
            tm = max(8, tm // 2)
        # K must be a multiple of tk (implicit edge blocks on the contraction
        # dim would fold garbage into the accumulator).
        Kp = _round_up(K, tk)

    # ---- padding: only the misaligned dims, no dtype change on x / W -------
    wt = weight.T                       # (K, N), small for a classifier head
    xp = x
    if Kp != K:
        xp = jnp.pad(xp, ((0, 0), (0, Kp - K)))          # zero rows: exact
        wt = jnp.pad(wt, ((0, Kp - K), (0, 0)))
    if Np != N:
        wt = jnp.pad(wt, ((0, 0), (0, Np - N)))
    bp = bias.astype(jnp.float32).reshape(1, N)
    if Np != N:
        bp = jnp.pad(bp, ((0, 0), (0, Np - N)))

    grid_m = _cdiv(B, tm)
    grid_n = _cdiv(Np, tn)

    if fullk:
        grid = (grid_m, grid_n)
        in_specs = [
            pl.BlockSpec((tm, Kp), lambda i, j: (i, 0)),   # x tile (full K)
            pl.BlockSpec((Kp, tn), lambda i, j: (0, j)),   # W.T tile (resident)
            pl.BlockSpec((1, tn), lambda i, j: (0, j)),    # bias tile
        ]
        out_specs = pl.BlockSpec((tm, tn), lambda i, j: (i, j))
        scratch = []
        kernel = _linear_fullk_kernel
        semantics = ("parallel", "parallel")
    else:
        grid = (grid_m, grid_n, Kp // tk)
        in_specs = [
            pl.BlockSpec((tm, tk), lambda i, j, k: (i, k)),
            pl.BlockSpec((tk, tn), lambda i, j, k: (k, j)),
            pl.BlockSpec((1, tn), lambda i, j, k: (0, j)),
        ]
        out_specs = pl.BlockSpec((tm, tn), lambda i, j, k: (i, j))
        scratch = [pltpu.VMEM((tm, tn), jnp.float32)]
        kernel = _linear_ktiled_kernel
        semantics = ("parallel", "parallel", "arbitrary")

    out = pl.pallas_call(
        kernel,
        out_shape=jax.ShapeDtypeStruct((B, Np), out_dtype),
        grid_spec=pltpu.PrefetchScalarGridSpec(
            num_scalar_prefetch=0,
            grid=grid,
            in_specs=in_specs,
            out_specs=out_specs,
            scratch_shapes=scratch,
        ),
        compiler_params=pltpu.CompilerParams(
            dimension_semantics=semantics,
            vmem_limit_bytes=_VMEM_LIMIT_BYTES,
        ),
    )(xp, wt, bp)

    if Np != N:
        out = out[:, :N]
    return out


@functools.partial(jax.jit, static_argnames=("out_dtype", "force_pallas"))
def classifier_forward(x, weight, bias, *, out_dtype=jnp.float32,
                       force_pallas=False):
    """y = x @ weight.T + bias  (nn.Linear / Classifier.forward).

    x: (B, in_features), weight: (num_classes, in_features),
    bias: (num_classes,).  Returns (B, num_classes) in `out_dtype`.
    Inputs are used in their own dtype (keep x / weight in bf16 for best
    TPU throughput); accumulation is always f32.
    """
    B, K = x.shape
    N, K2 = weight.shape
    assert K == K2 and bias.shape == (N,)

    # Tiny problems: pallas_call launch + padding would dominate, use plain XLA.
    small = (B * K < _PALLAS_MIN_ELEMS) and (N * K < _PALLAS_MIN_ELEMS)
    if small and not force_pallas:
        acc = jnp.dot(x, weight.T, preferred_element_type=jnp.float32)
        return (acc + bias.astype(jnp.float32)).astype(out_dtype)

    return _classifier_forward_pallas(x, weight, bias, out_dtype=out_dtype)


if __name__ == "__main__":
    key = jax.random.PRNGKey(0)
    kx, kw, kb = jax.random.split(key, 3)

    # Small shapes consistent with Classifier(in_features, num_classes).
    batch, in_features, num_classes = 16, 256, 10
    x = jax.random.normal(kx, (batch, in_features), dtype=jnp.float32)
    weight = jax.random.normal(kw, (num_classes, in_features), jnp.float32) * 0.1
    bias = jax.random.normal(kb, (num_classes,), dtype=jnp.float32) * 0.1

    # Keep activations / weights in bf16 (native MXU path); bias stays f32.
    x_bf16 = x.astype(jnp.bfloat16)
    w_bf16 = weight.astype(jnp.bfloat16)

    # f32 reference built from the same bf16-rounded operands.
    ref = (np.asarray(x_bf16, np.float32) @ np.asarray(w_bf16, np.float32).T
           + np.asarray(bias, np.float32))

    # 1) Force the Pallas path (the auto path bypasses Pallas at this toy size).
    out = classifier_forward(x_bf16, w_bf16, bias, force_pallas=True)
    out = jax.block_until_ready(out)
    assert out.shape == (batch, num_classes), out.shape
    assert out.dtype == jnp.float32
    np.testing.assert_allclose(np.asarray(out), ref, rtol=1e-4, atol=1e-4)

    # 2) Auto path (small-problem XLA bypass) must agree too.
    out_auto = jax.block_until_ready(classifier_forward(x_bf16, w_bf16, bias))
    np.testing.assert_allclose(np.asarray(out_auto), ref, rtol=1e-4, atol=1e-4)

    print("KERNEL_OK")
</pallas_src>

<mosaic_0001>
module attributes {stable_mosaic.version = 11 : i64} {
  func.func @_linear_fullk_kernel(%arg0: i32, %arg1: i32, %arg2: memref<8x256xbf16, #tpu.memory_space<vmem>>, %arg3: memref<256x128xbf16, #tpu.memory_space<vmem>>, %arg4: memref<1x128xf32, #tpu.memory_space<vmem>>, %arg5: memref<8x128xf32, #tpu.memory_space<vmem>>) attributes {dimension_semantics = [#tpu.dimension_semantics<parallel>, #tpu.dimension_semantics<parallel>], iteration_bounds = array<i64: 2, 1>, scalar_prefetch = 0 : i64, scratch_operands = 0 : i64, tpu.core_type = #tpu.core_type<tc>, window_params = [{transform_indices = @transform_0, window_bounds = array<i64: 8, 256>}, {transform_indices = @transform_1, window_bounds = array<i64: 256, 128>}, {transform_indices = @transform_2, window_bounds = array<i64: 1, 128>}, {transform_indices = @transform_3, window_bounds = array<i64: 8, 128>}]} {
    %c0 = arith.constant 0 : index
    %c0_0 = arith.constant 0 : index
    %0 = vector.load %arg2[%c0, %c0_0] : memref<8x256xbf16, #tpu.memory_space<vmem>>, vector<8x256xbf16>
    %c0_1 = arith.constant 0 : index
    %c0_2 = arith.constant 0 : index
    %1 = vector.load %arg3[%c0_1, %c0_2] : memref<256x128xbf16, #tpu.memory_space<vmem>>, vector<256x128xbf16>
    %cst = arith.constant dense<0.000000e+00> : vector<8x128xf32>
    %2 = tpu.matmul %0, %1, %cst {dimension_numbers = #tpu.dot_dimension_numbers<[1], [0], [0], [1], [0, 0, 1, 1], [], []>} : vector<8x256xbf16>, vector<256x128xbf16>, vector<8x128xf32> -> vector<8x128xf32>
    %c0_3 = arith.constant 0 : index
    %c0_4 = arith.constant 0 : index
    %3 = vector.load %arg4[%c0_3, %c0_4] : memref<1x128xf32, #tpu.memory_space<vmem>>, vector<1x128xf32>
    %4 = vector.broadcast %3 : vector<1x128xf32> to vector<8x128xf32>
    %5 = arith.addf %2, %4 : vector<8x128xf32>
    %c0_5 = arith.constant 0 : index
    %c0_6 = arith.constant 0 : index
    %6 = vector.load %arg5[%c0_5, %c0_6] : memref<8x128xf32, #tpu.memory_space<vmem>>, vector<8x128xf32>
    tpu.vector_store %arg5[%c0_5, %c0_6], %5 {strides = array<i32>} : memref<8x128xf32, #tpu.memory_space<vmem>>, vector<8x128xf32>,
    return
  }
  func.func @transform_0(%arg0: i32, %arg1: i32) -> (i32, i32) {
    %c0_i32 = arith.constant 0 : i32
    %c0_i32_0 = arith.constant 0 : i32
    return %arg0, %c0_i32 : i32, i32
  }
  func.func @transform_1(%arg0: i32, %arg1: i32) -> (i32, i32) {
    %c0_i32 = arith.constant 0 : i32
    %c0_i32_0 = arith.constant 0 : i32
    return %c0_i32, %arg1 : i32, i32
  }
  func.func @transform_2(%arg0: i32, %arg1: i32) -> (i32, i32) {
    %c0_i32 = arith.constant 0 : i32
    %c0_i32_0 = arith.constant 0 : i32
    return %c0_i32, %arg1 : i32, i32
  }
  func.func @transform_3(%arg0: i32, %arg1: i32) -> (i32, i32) {
    %c0_i32 = arith.constant 0 : i32
    return %arg0, %arg1 : i32, i32
  }
}

</mosaic_0001>

<llo_original>
// kernel: classifier_forward.1
$region0: #{classifier_forward.1}
  #allocation0 [shape = 'u32[]', space=smem, size = 0x4, offset = 0x4, fixed_abs, tag = 'smem constant byte address 0x4 - core index']
  #allocation1 [shape = 'u32[72,128]{1,0:T(1,128)}', space=vmem, size = 0x9000, scoped, tag = 'internal scratch']
  %s0 = inlined_call_operand.vmem [shape: bf16[16,256], index: 0, kind: input, shape index: {}]
  %s1 = inlined_call_operand.vmem [shape: bf16[256,128], index: 1, kind: input, shape index: {}]
  %s2 = inlined_call_operand.vmem [shape: f32[1,128], index: 2, kind: input, shape index: {}]
  %s3 = inlined_call_operand.hbm [shape: f32[16,128], index: 3, kind: output, shape index: {}]
  %s4 = sld [smem:[#allocation0]]
  $region45: #{classifier_forward.1} parent=0
    _
  %s6 = ssub.s32 1, %s4
  %s7 = scalar_select 0, %s6, %s4
  $region1: #{classifier_forward.1} parent=0
    #allocation2 [shape = 'u8[8192]{0}', space=vmem, size = 0x2000, scoped, tag = 'output window, operand 0']
    #allocation3 [shape = 's32[2]{0}', space=sflag, size = 0x8, scoped, tag = 'scoped memory for classifier_forward.1']
    %8 = vsyncpa [#allocation3], 0
    %s9 = scalar_lea.sflag [#allocation3], 1
    %10 = vsyncpa %s9, 0
    loop: start=0, step=1, limit=4
    $region2: #{classifier_forward.1} parent=1 // loop_pre_header
      _
    $region3: #{classifier_forward.1} parent=1 // loop_header
      %s12 = sphi 0, %s16
      %p13 = scmp.ge.s32.totalorder %s12, 4
      %s19 = sphi 0, %s31
      %s20 = sphi 0, %s27
      %s21 = sphi 0, %s19
      %s22 = sphi 0, %s20
      %s23 = sphi 0, %s21
      %s24 = sphi 0, %s22
      %s34 = sphi 0, %s36
      %s37 = sphi 0, %s34
      %s38 = sphi 0, %s37
      %s54 = sphi 0, %s38
      %s60 = sphi 0, %s62
      %s63 = sphi 0, %s60
      %s64 = sphi 0, %s63
      %s80 = sphi 0, %s64
      %s86 = sphi 0, %s88
      %s89 = sphi 0, %s86
      %s90 = sphi 0, %s89
      %s106 = sphi 0, %s90
      %s114 = sphi 0, %s116
      %s117 = sphi 0, %s114
      %s118 = sphi 0, %s117
      %s134 = sphi 0, %s118
    $region4: #{classifier_forward.1} parent=1 // loop_header_branch
      %15 = sbr.rel (%p13) target = $region8
    $region5: #{classifier_forward.1} parent=1 // loop_body
      %s17 = ssub.s32 %s12, 1
      %s18 = ssub.s32 %s12, 2
      %s25 = sadd.s32 1, %s20
      %p26 = scmp.ge.s32.totalorder %s25, 1
      %s27 = scalar_select %p26, 0, %s25
      %s28 = sadd.s32 1, %s19
      %s29 = scalar_select %p26, %s28, %s19
      %p30 = scmp.ge.s32.totalorder %s29, 2
      %s31 = scalar_select %p30, 0, %s29
      %s32 = ssub.s32 %s19, %s31
      %p33 = scmp.eq.s32.totalorder %s32, 0
      %s35 = sadd.s32 %s34, 1
      %s36 = scalar_select %p33, %s34, %s35
      %p39 = pneg %p33
      %p40 = scmp.eq.s32.totalorder %s12, 1
      %p41 = por %p39, %p40
      %p42 = scmp.ne.s32.totalorder %s34, %s37
      %p43 = scmp.eq.s32.totalorder %s12, 0
      %p44 = por %p42, %p43
      %p45 = scmp.ne.s32.totalorder %s34, %s37
      %p46 = scmp.eq.s32.totalorder %s17, 1
      %p47 = por %p45, %p46
      %p48 = scmp.ne.s32.totalorder %s37, %s38
      %p49 = scmp.eq.s32.totalorder %s17, 0
      %p50 = por %p48, %p49
      %p51 = scmp.ne.s32.totalorder %s37, %s38
      %p52 = scmp.eq.s32.totalorder %s18, 1
      %p53 = por %p51, %p52
      %p55 = scmp.ne.s32.totalorder %s38, %s54
      %p56 = scmp.eq.s32.totalorder %s18, 0
      %p57 = por %p55, %p56
      %s58 = ssub.s32 %s20, %s27
      %p59 = scmp.eq.s32.totalorder %s58, 0
      %s61 = sadd.s32 %s60, 1
      %s62 = scalar_select %p59, %s60, %s61
      %p65 = pneg %p59
      %p66 = scmp.eq.s32.totalorder %s12, 1
      %p67 = por %p65, %p66
      %p68 = scmp.ne.s32.totalorder %s60, %s63
      %p69 = scmp.eq.s32.totalorder %s12, 0
      %p70 = por %p68, %p69
      %p71 = scmp.ne.s32.totalorder %s60, %s63
      %p72 = scmp.eq.s32.totalorder %s17, 1
      %p73 = por %p71, %p72
      %p74 = scmp.ne.s32.totalorder %s63, %s64
      %p75 = scmp.eq.s32.totalorder %s17, 0
      %p76 = por %p74, %p75
      %p77 = scmp.ne.s32.totalorder %s63, %s64
      %p78 = scmp.eq.s32.totalorder %s18, 1
      %p79 = por %p77, %p78
      %p81 = scmp.ne.s32.totalorder %s64, %s80
      %p82 = scmp.eq.s32.totalorder %s18, 0
      %p83 = por %p81, %p82
      %s84 = ssub.s32 %s20, %s27
      %p85 = scmp.eq.s32.totalorder %s84, 0
      %s87 = sadd.s32 %s86, 1
      %s88 = scalar_select %p85, %s86, %s87
      %p91 = pneg %p85
      %p92 = scmp.eq.s32.totalorder %s12, 1
      %p93 = por %p91, %p92
      %p94 = scmp.ne.s32.totalorder %s86, %s89
      %p95 = scmp.eq.s32.totalorder %s12, 0
      %p96 = por %p94, %p95
      %p97 = scmp.ne.s32.totalorder %s86, %s89
      %p98 = scmp.eq.s32.totalorder %s17, 1
      %p99 = por %p97, %p98
      %p100 = scmp.ne.s32.totalorder %s89, %s90
      %p101 = scmp.eq.s32.totalorder %s17, 0
      %p102 = por %p100, %p101
      %p103 = scmp.ne.s32.totalorder %s89, %s90
      %p104 = scmp.eq.s32.totalorder %s18, 1
      %p105 = por %p103, %p104
      %p107 = scmp.ne.s32.totalorder %s90, %s106
      %p108 = scmp.eq.s32.totalorder %s18, 0
      %p109 = por %p107, %p108
      %s110 = ssub.s32 %s19, %s31
      %s111 = ssub.s32 %s20, %s27
      %s112 = sor.u32 %s110, %s111
      %p113 = scmp.eq.s32.totalorder %s112, 0
      %s115 = sadd.s32 %s114, 1
      %s116 = scalar_select %p113, %s114, %s115
      %p119 = pneg %p113
      %p120 = scmp.eq.s32.totalorder %s12, 1
      %p121 = por %p119, %p120
      %p122 = scmp.ne.s32.totalorder %s114, %s117
      %p123 = scmp.eq.s32.totalorder %s12, 0
      %p124 = por %p122, %p123
      %p125 = scmp.ne.s32.totalorder %s114, %s117
      %p126 = scmp.eq.s32.totalorder %s17, 1
      %p127 = por %p125, %p126
      %p128 = scmp.ne.s32.totalorder %s117, %s118
      %p129 = scmp.eq.s32.totalorder %s17, 0
      %p130 = por %p128, %p129
      %p131 = scmp.ne.s32.totalorder %s117, %s118
      %p132 = scmp.eq.s32.totalorder %s18, 1
      %p133 = por %p131, %p132
      %p135 = scmp.ne.s32.totalorder %s118, %s134
      %p136 = scmp.eq.s32.totalorder %s18, 0
      %p137 = por %p135, %p136
      %p138 = scmp.le.s32.totalorder 1, %s12
      %p139 = scmp.lt.s32.totalorder %s12, 3
      %p140 = pnand %p138, %p139
      %p141 = pneg %p140
      // Predicated region
      $region9: #{classifier_forward.1} parent=5 // pred_check
        _
      $region10: #{classifier_forward.1} parent=5 // pred_check_branch
        %143 = sbr.rel (%p140) target = $region12
      $region11: #{classifier_forward.1} parent=5 // pred_region
        %s144 = ssub.s32 %s12, 1
        // Predicated region
        $region13: #{classifier_forward.1} parent=11 // pred_check
          %p145 = pneg %p76
        $region14: #{classifier_forward.1} parent=11 // pred_check_branch
          %147 = sbr.rel (%p145) target = $region16
        $region15: #{classifier_forward.1} parent=11 // pred_region
          %p148 = scmp.lt.s32.totalorder %s22, 0
          %s149 = scalar_select %p148, %s22, 0
          %s150 = smul.addr %s149, 4
          %s151 = scalar_lea.vmem %s1, %s150
        $region16: #{classifier_forward.1} parent=11 // pred_fallthru
          _
        // Predicated region
        $region17: #{classifier_forward.1} parent=11 // pred_check
          %p152 = pneg %p102
        $region18: #{classifier_forward.1} parent=11 // pred_check_branch
          %154 = sbr.rel (%p152) target = $region20
        $region19: #{classifier_forward.1} parent=11 // pred_region
          %p155 = scmp.lt.s32.totalorder %s22, 0
          %s156 = scalar_select %p155, %s22, 0
          %s157 = scalar_lea.vmem %s2, %s156
        $region20: #{classifier_forward.1} parent=11 // pred_fallthru
          _
      $region12: #{classifier_forward.1} parent=5 // pred_fallthru
        _
      %p158 = scmp.lt.s32.totalorder %s12, 2
      // Predicated region
      $region21: #{classifier_forward.1} parent=5 // pred_check
        %p159 = pneg %p158
      $region22: #{classifier_forward.1} parent=5 // pred_check_branch
        %161 = sbr.rel (%p159) target = $region24
      $region23: #{classifier_forward.1} parent=5 // pred_region
        // Predicated region
        $region25: #{classifier_forward.1} parent=23 // pred_check
          %p162 = pneg %p44
        $region26: #{classifier_forward.1} parent=23 // pred_check_branch
          %164 = sbr.rel (%p162) target = $region28
        $region27: #{classifier_forward.1} parent=23 // pred_region
          %p165 = scmp.lt.s32.totalorder %s19, 1
          %s166 = scalar_select %p165, %s19, 1
          %s167 = smul.addr %s166, 2
          %s168 = smul.addr %s167, 4
          %s169 = scalar_lea.vmem %s0, %s168
        $region28: #{classifier_forward.1} parent=23 // pred_fallthru
          _
      $region24: #{classifier_forward.1} parent=5 // pred_fallthru
        _
      %p170 = scmp.le.s32.totalorder 1, %s12
      %p171 = scmp.lt.s32.totalorder %s12, 3
      %p172 = pnand %p170, %p171
      %p173 = pneg %p172
      // Predicated region
      $region29: #{classifier_forward.1} parent=5 // pred_check
        _
      $region30: #{classifier_forward.1} parent=5 // pred_check_branch
        %175 = sbr.rel (%p172) target = $region32
      $region31: #{classifier_forward.1} parent=5 // pred_region
        %s176 = ssub.s32 %s12, 1
        %p177 = scmp.lt.s32.totalorder %s21, 1
        %s178 = scalar_select %p177, %s21, 1
        %s179 = smul.addr %s178, 2
        %s180 = smul.addr %s179, 4
        %s181 = scalar_lea.vmem %s0, %s180
        %p182 = pneg %p50
        %p183 = pneg %p47
        %p184 = scmp.lt.s32.totalorder %s22, 0
        %s185 = scalar_select %p184, %s22, 0
        %s186 = smul.addr %s185, 4
        %s187 = scalar_lea.vmem %s1, %s186
        %p188 = pneg %p76
        %p189 = pneg %p73
        %p190 = scmp.lt.s32.totalorder %s22, 0
        %s191 = scalar_select %p190, %s22, 0
        %s192 = scalar_lea.vmem %s2, %s191
        %p193 = pneg %p102
        %p194 = pneg %p99
        %p195 = pneg %p130
        %p196 = pneg %p127
        %s197 = sand.u32 %s117, 1
        %s198 = scalar_lea.sflag [#allocation3], %s197
        %s199 = sand.u32 %s117, 1
        %s200 = smul.addr %s199, 8
        %s201 = scalar_lea.vmem [#allocation2], %s200
        %p202 = scmp.lt.s32.totalorder %s21, 1
        %s203 = scalar_select %p202, %s21, 1
        %s204 = smul.addr %s203, 2
        %s205 = smul.addr %s204, 4
        %s206 = scalar_lea.vmem %s0, %s205
        %p207 = scmp.lt.s32.totalorder %s22, 0
        %s208 = scalar_select %p207, %s22, 0
        %s209 = smul.addr %s208, 4
        %s210 = scalar_lea.vmem %s1, %s209
        %p211 = scmp.lt.s32.totalorder %s22, 0
        %s212 = scalar_select %p211, %s22, 0
        %s213 = scalar_lea.vmem %s2, %s212
        %v214 = vld [vmem:[%s206] sm:$0xff]
        %v215 = vld [vmem:[%s210] sm:$0xf]
        %v216 = vld [vmem:[%s210 + $0x4] sm:$0xf]
        %v217 = vld [vmem:[%s210 + $0x8] sm:$0xf]
        %v218 = vld [vmem:[%s210 + $0xc] sm:$0xf]
        %v219 = vld [vmem:[%s210 + $0x10] sm:$0xf]
        %v220 = vld [vmem:[%s210 + $0x14] sm:$0xf]
        %v221 = vld [vmem:[%s210 + $0x18] sm:$0xf]
        %v222 = vld [vmem:[%s210 + $0x1c] sm:$0xf]
        %v223 = vld [vmem:[%s210 + $0x20] sm:$0xf]
        %v224 = vld [vmem:[%s210 + $0x24] sm:$0xf]
        %v225 = vld [vmem:[%s210 + $0x28] sm:$0xf]
        %v226 = vld [vmem:[%s210 + $0x2c] sm:$0xf]
        %v227 = vld [vmem:[%s210 + $0x30] sm:$0xf]
        %v228 = vld [vmem:[%s210 + $0x34] sm:$0xf]
        %v229 = vld [vmem:[%s210 + $0x38] sm:$0xf]
        %v230 = vld [vmem:[%s210 + $0x3c] sm:$0xf]
        %v231 = vld [vmem:[%s210 + $0x40] sm:$0xf]
        %v232 = vld [vmem:[%s210 + $0x44] sm:$0xf]
        %v233 = vld [vmem:[%s210 + $0x48] sm:$0xf]
        %v234 = vld [vmem:[%s210 + $0x4c] sm:$0xf]
        %v235 = vld [vmem:[%s210 + $0x50] sm:$0xf]
        %v236 = vld [vmem:[%s210 + $0x54] sm:$0xf]
        %v237 = vld [vmem:[%s210 + $0x58] sm:$0xf]
        %v238 = vld [vmem:[%s210 + $0x5c] sm:$0xf]
        %v239 = vld [vmem:[%s210 + $0x60] sm:$0xf]
        %v240 = vld [vmem:[%s210 + $0x64] sm:$0xf]
        %v241 = vld [vmem:[%s210 + $0x68] sm:$0xf]
        %v242 = vld [vmem:[%s210 + $0x6c] sm:$0xf]
        %v243 = vld [vmem:[%s210 + $0x70] sm:$0xf]
        %v244 = vld [vmem:[%s210 + $0x74] sm:$0xf]
        %v245 = vld [vmem:[%s210 + $0x78] sm:$0xf]
        %v246 = vld [vmem:[%s210 + $0x7c] sm:$0xf]
        %v247 = vld [vmem:[%s213] sm:$0x1]
        %v249 = vperm.slane %v247, 0
        %v252 = vunpack.c.l.b16 %v214
        %v253 = vunpack.c.h.b16 %v214
        %v254 = vpack.c.b16 %v252, %v252
        %v255 = vpack.c.b16 %v253, %v253
        %v290 = vunpack.c.l.b16 %v215
        %v291 = vunpack.c.l.b16 %v216
        %v292 = vunpack.c.l.b16 %v217
        %v293 = vunpack.c.l.b16 %v218
        %v294 = vunpack.c.l.b16 %v219
        %v295 = vunpack.c.l.b16 %v220
        %v296 = vunpack.c.l.b16 %v221
        %v297 = vunpack.c.l.b16 %v222
        %v298 = vunpack.c.l.b16 %v223
        %v299 = vunpack.c.l.b16 %v224
        %v300 = vunpack.c.l.b16 %v225
        %v301 = vunpack.c.l.b16 %v226
        %v302 = vunpack.c.l.b16 %v227
        %v303 = vunpack.c.l.b16 %v228
        %v304 = vunpack.c.l.b16 %v229
        %v305 = vunpack.c.l.b16 %v230
        %v306 = vunpack.c.l.b16 %v231
        %v307 = vunpack.c.l.b16 %v232
        %v308 = vunpack.c.l.b16 %v233
        %v309 = vunpack.c.l.b16 %v234
        %v310 = vunpack.c.l.b16 %v235
        %v311 = vunpack.c.l.b16 %v236
        %v312 = vunpack.c.l.b16 %v237
        %v313 = vunpack.c.l.b16 %v238
        %v314 = vunpack.c.l.b16 %v239
        %v315 = vunpack.c.l.b16 %v240
        %v316 = vunpack.c.l.b16 %v241
        %v317 = vunpack.c.l.b16 %v242
        %v318 = vunpack.c.l.b16 %v243
        %v319 = vunpack.c.l.b16 %v244
        %v320 = vunpack.c.l.b16 %v245
        %v321 = vunpack.c.l.b16 %v246
        %v322 = vpack.c.b16 %v291, %v290
        %v323 = vpack.c.b16 %v293, %v292
        %v324 = vpack.c.b16 %v295, %v294
        %v325 = vpack.c.b16 %v297, %v296
        %v326 = vpack.c.b16 %v299, %v298
        %v327 = vpack.c.b16 %v301, %v300
        %v328 = vpack.c.b16 %v303, %v302
        %v329 = vpack.c.b16 %v305, %v304
        %v330 = vpack.c.b16 %v307, %v306
        %v331 = vpack.c.b16 %v309, %v308
        %v332 = vpack.c.b16 %v311, %v310
        %v333 = vpack.c.b16 %v313, %v312
        %v334 = vpack.c.b16 %v315, %v314
        %v335 = vpack.c.b16 %v317, %v316
        %v336 = vpack.c.b16 %v319, %v318
        %v337 = vpack.c.b16 %v321, %v320
        %354 = vmatpush.bf16.msra.mxu0 %v329
        %355 = vmatpush.bf16.msra.mxu0 %v328
        %356 = vmatpush.bf16.msra.mxu0 %v327
        %357 = vmatpush.bf16.msra.mxu0 %v326
        %358 = vmatpush.bf16.msra.mxu0 %v325
        %359 = vmatpush.bf16.msra.mxu0 %v324
        %360 = vmatpush.bf16.msra.mxu0 %v323
        %361 = vmatpush.bf16.msra.mxu0 %v322
        %362 = vmatmul.bf16.gmra.mxu0 %v254
        %v363 = vpop.f32.mrf.mxu0
        %v364 = vadd.f32 %v249, %v363
        %v365 = vpop.f32.mrf.mxu0
        %366 = vdwg.mxu0
        %367 = vmatpush.bf16.msra.mxu0 %v337
        %368 = vmatpush.bf16.msra.mxu0 %v336
        %369 = vmatpush.bf16.msra.mxu0 %v335
        %370 = vmatpush.bf16.msra.mxu0 %v334
        %371 = vmatpush.bf16.msra.mxu0 %v333
        %372 = vmatpush.bf16.msra.mxu0 %v332
        %373 = vmatpush.bf16.msra.mxu0 %v331
        %374 = vmatpush.bf16.msra.mxu0 %v330
        %375 = vmatmul.bf16.gmra.mxu0 %v255
        %v376 = vpop.f32.mrf.mxu0
        %v377 = vadd.f32 %v364, %v376
        %v378 = vpop.f32.mrf.mxu0
        %379 = vdwg.mxu0
        %380 = vst [vmem:[%s201] sm:$0xff] %v377
        %s381 = sand.u32 %s117, 1
        %s382 = scalar_lea.sflag [#allocation3], %s381
        %s383 = sand.u32 %s117, 1
        %s384 = smul.addr %s383, 8
        %s385 = scalar_lea.vmem [#allocation2], %s384
        // Predicated region
        $region33: #{classifier_forward.1} parent=31 // pred_check
          %p386 = pneg %p127
        $region34: #{classifier_forward.1} parent=31 // pred_check_branch
          %388 = sbr.rel (%p386) target = $region36
        $region35: #{classifier_forward.1} parent=31 // pred_region
          %390 = vsyncadd %s382, 0
          %s391 = sadd.s32 %s22, %s21
          %s392 = smul.addr %s391, 8
          %s393 = scalar_lea.hbm %s3, %s392
          %s395 = sshll.u32 %s385, 4
          %s396 = int_to_ptr.vmem [resolvable:$true] %s395
          %s397 = sshll.u32 %s393, 4
          %s398 = int_to_ptr.hbm [resolvable:$true] %s397
          %400 = dma.vmem_to_hbm [thread:$0]  %s396, 128, %s398, %s382
        $region36: #{classifier_forward.1} parent=31 // pred_fallthru
          _
      $region32: #{classifier_forward.1} parent=5 // pred_fallthru
        _
      %p401 = scmp.le.s32.totalorder 2, %s12
      // Predicated region
      $region37: #{classifier_forward.1} parent=5 // pred_check
        %p402 = pneg %p401
      $region38: #{classifier_forward.1} parent=5 // pred_check_branch
        %404 = sbr.rel (%p402) target = $region40
      $region39: #{classifier_forward.1} parent=5 // pred_region
        %s405 = ssub.s32 %s12, 2
        // Predicated region
        $region41: #{classifier_forward.1} parent=39 // pred_check
          %p406 = pneg %p133
        $region42: #{classifier_forward.1} parent=39 // pred_check_branch
          %408 = sbr.rel (%p406) target = $region44
        $region43: #{classifier_forward.1} parent=39 // pred_region
          %s409 = sand.u32 %s118, 1
          %s410 = scalar_lea.sflag [#allocation3], %s409
          %s411 = sand.u32 %s118, 1
          %s412 = smul.addr %s411, 8
          %s413 = scalar_lea.vmem [#allocation2], %s412
          %415 = dma.done %s410, 128
        $region44: #{classifier_forward.1} parent=39 // pred_fallthru
          _
      $region40: #{classifier_forward.1} parent=5 // pred_fallthru
        _
    $region6: #{classifier_forward.1} parent=1 // loop_footer
      %s16 = sadd.s32 1, %s12
    $region7: #{classifier_forward.1} parent=1 // loop_footer_branch
      %11 = sbr.rel target = $region3
    $region8: #{classifier_forward.1} parent=1 // loop_exit
      _
    %416 = vsyncpa [#allocation3], 1
    %s417 = scalar_lea.sflag [#allocation3], 1
    %418 = vsyncpa %s417, 1

</llo_original>
